<compile_context>
chip_gen: v7x
topology: tpu7x:2x2x1
jax: 0.10.0
libtpu: 0.0.40
codegen_flags: <defaults>
</compile_context>

<pallas_src>
import functools
import numpy as np

import jax
import jax.numpy as jnp
from jax.experimental import pallas as pl
from jax.experimental.pallas import tpu as pltpu


OUT_PAD = 128  # lane-dense packed output width: [pi_logits | q_pred | zeros]


# ----------------------------- Pallas kernel --------------------------------
def _vpt_forward_kernel(
    obs_ref,        # [Bp, F]        f32 flattened observation (padded batch)
    first_ref,      # [Bp, 1]        f32, 1.0 where episode starts
    hs_ref,         # [Bp, D]        f32 recurrent hidden state
    w_enc_ref,      # [F, D]         bf16
    b_enc_ref,      # [1, D]         f32
    w_core_ref,     # [2D, D]        bf16  (= vstack(w_h, w_r))
    b_core_ref,     # [1, D]         f32
    w_heads_ref,    # [D, 2D]        bf16  (= hstack(w_pih, w_qh))
    b_heads_ref,    # [1, 2D]        f32
    w_out_ref,      # [2D, OUT_PAD]  bf16 block-diag: [:D,:A]=w_pi, [D:,A:2A]=w_q
    b_out_ref,      # [1, OUT_PAD]   f32
    # outputs
    out_slab_ref,   # [Bp, OUT_PAD]  f32  packed [pi_logits | q_pred | 0]
    heads_ref,      # [Bp, 2D]       f32  packed [pi_h | q_h]
    new_state_ref,  # [Bp, D]        f32  new recurrent state
):
    # Image encoder: dense (bf16 x bf16, f32 accumulate) + ReLU.
    obs = obs_ref[...].astype(jnp.bfloat16)
    h_img = jnp.dot(obs, w_enc_ref[...], preferred_element_type=jnp.float32)
    h_img = jnp.maximum(h_img + b_enc_ref[...], 0.0)

    # Recurrent core: reset hidden state where `first`, then ONE fused matmul
    # over the stacked [h_img | hs] input against [[w_h],[w_r]].
    hs = hs_ref[...] * (1.0 - first_ref[...])
    core_in = jnp.concatenate([h_img, hs], axis=1).astype(jnp.bfloat16)  # [Bp, 2D]
    h_core = jnp.tanh(
        jnp.dot(core_in, w_core_ref[...], preferred_element_type=jnp.float32)
        + b_core_ref[...])

    # Fused pi/q feature heads: a single [D, 2D] matmul -> [pi_h | q_h].
    heads = jnp.dot(h_core.astype(jnp.bfloat16), w_heads_ref[...],
                    preferred_element_type=jnp.float32) + b_heads_ref[...]
    heads = jnp.maximum(heads, 0.0)

    # Fused output heads: block-diagonal [2D, OUT_PAD] weight, single
    # lane-dense (N=128) matmul producing [pi_logits | q_pred | 0-pad].
    out_slab_ref[...] = (
        jnp.dot(heads.astype(jnp.bfloat16), w_out_ref[...],
                preferred_element_type=jnp.float32) + b_out_ref[...])

    heads_ref[...] = heads
    new_state_ref[...] = h_core


def _vmem_spec():
    return pl.BlockSpec(memory_space=pltpu.MemorySpace.VMEM)


@functools.partial(jax.jit, static_argnames=("n_actions",))
def vpt_forward_pallas(obs_flat, first_f32, hidden_state, packed, *, n_actions):
    """obs_flat: [B, F] f32; first_f32: [B, 1] f32; hidden_state: [B, D] f32."""
    B, _ = obs_flat.shape
    D = hidden_state.shape[1]
    A = n_actions
    Bp = max(8, ((B + 7) // 8) * 8)  # pad batch to a sublane multiple

    obs_p = jnp.pad(obs_flat, ((0, Bp - B), (0, 0)))
    first_p = jnp.pad(first_f32, ((0, Bp - B), (0, 0)), constant_values=1.0)
    hs_p = jnp.pad(hidden_state, ((0, Bp - B), (0, 0)))

    in_arrays = (
        obs_p, first_p, hs_p,
        packed["w_enc"], packed["b_enc"],
        packed["w_core"], packed["b_core"],
        packed["w_heads"], packed["b_heads"],
        packed["w_out"], packed["b_out"],
    )
    out_shape = (
        jax.ShapeDtypeStruct((Bp, OUT_PAD), jnp.float32),  # packed logits/q
        jax.ShapeDtypeStruct((Bp, 2 * D), jnp.float32),    # packed pi_h | q_h
        jax.ShapeDtypeStruct((Bp, D), jnp.float32),        # new_agent_state
    )
    out_slab, heads, new_state = pl.pallas_call(
        _vpt_forward_kernel,
        out_shape=out_shape,
        in_specs=[_vmem_spec() for _ in in_arrays],
        out_specs=tuple(_vmem_spec() for _ in out_shape),
    )(*in_arrays)

    pi_logits = out_slab[:B, :A]
    q_pred = out_slab[:B, A:2 * A]
    pi_h = heads[:B, :D]
    q_h = heads[:B, D:]
    new_state = new_state[:B]
    return pi_logits, q_pred, pi_h, q_h, new_state


# --------------------------- Parameter packing -------------------------------
def pack_vpt_params(p):
    """Fuse/stack the per-layer params into kernel-ready bf16 blocks."""
    D = p["w_h"].shape[0]
    A = p["w_pi"].shape[1]
    assert 2 * A <= OUT_PAD, "packed output slab too narrow"

    w_core = jnp.concatenate([p["w_h"], p["w_r"]], axis=0)        # [2D, D]
    w_heads = jnp.concatenate([p["w_pih"], p["w_qh"]], axis=1)    # [D, 2D]
    b_heads = jnp.concatenate([p["b_pih"], p["b_qh"]], axis=1)    # [1, 2D]

    w_out = jnp.zeros((2 * D, OUT_PAD), jnp.float32)
    w_out = w_out.at[:D, :A].set(p["w_pi"])
    w_out = w_out.at[D:, A:2 * A].set(p["w_q"])
    b_out = jnp.zeros((1, OUT_PAD), jnp.float32)
    b_out = b_out.at[:, :A].set(p["b_pi"][0])
    b_out = b_out.at[:, A:2 * A].set(p["b_q"][0])

    bf = lambda x: x.astype(jnp.bfloat16)
    packed = {
        "w_enc": bf(p["w_enc"]), "b_enc": p["b_enc"].astype(jnp.float32),
        "w_core": bf(w_core), "b_core": p["b_core"].astype(jnp.float32),
        "w_heads": bf(w_heads), "b_heads": b_heads.astype(jnp.float32),
        "w_out": bf(w_out), "b_out": b_out,
    }
    return packed, A


# ------------------------- Wrapper (mirrors torch) ---------------------------
class VPTActorCriticWrapperPallas:
    """JAX/Pallas port of VPT_actor_critic_wrapper's forward-pass semantics."""

    def __init__(self, params, batch_size, hidden_dim):
        self.packed, self.n_actions = pack_vpt_params(params)
        self.batch_size = batch_size
        self.first = jnp.ones((batch_size, 1), dtype=bool)
        self.prev_episode_id = None
        # initial_state(batch_size)
        self.episode_hidden_states = jnp.zeros((batch_size, hidden_dim), jnp.float32)
        # TODO(synk): target-network path (vpt_policy_target / agent_state_target)
        # would reuse the same kernel with a second packed parameter set.

    def get_first(self, episode_id):
        if self.prev_episode_id is None:
            first = self.first
        else:
            # Verbatim original semantics: np.in1d(episode_id, prev_episode_id).
            # np.in1d was removed in numpy>=2; np.isin is its exact replacement.
            f = np.isin(np.asarray(episode_id), np.asarray(self.prev_episode_id))
            first = jnp.asarray(np.reshape(f, (-1, 1)))
        return first

    def forward(self, obs, episode_id, action=None, update_agent_state=False,
                eval_policy_head=True):
        # obs is NCHW [B, C, H, W]; flatten in torch .view order.
        B = obs.shape[0]
        obs_flat = jnp.reshape(obs, (B, -1)).astype(jnp.float32)
        first = self.get_first(episode_id).astype(jnp.float32)

        pi_logits, q_pred, pi_h, q_h, new_agent_state = vpt_forward_pallas(
            obs_flat, first, self.episode_hidden_states, self.packed,
            n_actions=self.n_actions)

        if update_agent_state:
            self.episode_hidden_states = jax.lax.stop_gradient(new_agent_state)
            self.prev_episode_id = episode_id

        if not eval_policy_head:
            pi_logits = None
        return pi_logits, q_pred, pi_h, q_h

    __call__ = forward

    def actor(self, obs, episode_id, update_agent_state=False):
        pi_logits, _, _, _ = self(obs, episode_id, update_agent_state=update_agent_state)
        return pi_logits

    def critic(self, obs, action, episode_id, update_agent_state=False):
        _, q_pred, _, q_h = self(obs, episode_id, action=action,
                                 update_agent_state=update_agent_state,
                                 eval_policy_head=False)
        return q_pred, q_h


# ------------------------------- Param init ----------------------------------
def init_params(key, feat_dim, hidden_dim, n_actions):
    ks = jax.random.split(key, 8)
    s = lambda fan_in: 1.0 / np.sqrt(fan_in)
    p = {
        "w_enc": jax.random.normal(ks[0], (feat_dim, hidden_dim), jnp.float32) * s(feat_dim),
        "b_enc": jnp.zeros((1, hidden_dim), jnp.float32),
        "w_h":   jax.random.normal(ks[1], (hidden_dim, hidden_dim), jnp.float32) * s(hidden_dim),
        "w_r":   jax.random.normal(ks[2], (hidden_dim, hidden_dim), jnp.float32) * s(hidden_dim),
        "b_core": jnp.zeros((1, hidden_dim), jnp.float32),
        "w_pih": jax.random.normal(ks[3], (hidden_dim, hidden_dim), jnp.float32) * s(hidden_dim),
        "b_pih": jnp.zeros((1, hidden_dim), jnp.float32),
        "w_qh":  jax.random.normal(ks[4], (hidden_dim, hidden_dim), jnp.float32) * s(hidden_dim),
        "b_qh":  jnp.zeros((1, hidden_dim), jnp.float32),
        "w_pi":  jax.random.normal(ks[5], (hidden_dim, n_actions), jnp.float32) * s(hidden_dim),
        "b_pi":  jnp.zeros((1, n_actions), jnp.float32),
        "w_q":   jax.random.normal(ks[6], (hidden_dim, n_actions), jnp.float32) * s(hidden_dim),
        "b_q":   jnp.zeros((1, n_actions), jnp.float32),
    }
    return p


# ---------------------------------- Main --------------------------------------
if __name__ == "__main__":
    B, C, H, W = 2, 4, 16, 16
    D = 128          # recurrent / feature hidden dim (lane aligned)
    A = 8            # number of action logits
    F = C * H * W

    key = jax.random.PRNGKey(0)
    k_obs, k_par = jax.random.split(key)

    params = init_params(k_par, F, D, A)
    wrapper = VPTActorCriticWrapperPallas(params, batch_size=B, hidden_dim=D)

    obs = jax.random.normal(k_obs, (B, C, H, W), jnp.float32)   # NCHW
    episode_id = np.array([0, 1], dtype=np.int64)

    # First call: prev_episode_id is None -> first = ones(B, 1) (reset hidden).
    pi_logits, q_pred, pi_h, q_h = wrapper.forward(
        obs, episode_id, update_agent_state=True)
    jax.block_until_ready((pi_logits, q_pred, pi_h, q_h))

    # Second call exercises the recurrent state + get_first path.
    q_pred2, obs_emb2 = wrapper.critic(obs, action=None, episode_id=episode_id)
    jax.block_until_ready((q_pred2, obs_emb2))

    assert pi_logits.shape == (B, A)
    assert q_pred.shape == (B, A)
    assert pi_h.shape == (B, D) and q_h.shape == (B, D)
    assert q_pred2.shape == (B, A) and obs_emb2.shape == (B, D)
    assert bool(jnp.all(jnp.isfinite(pi_logits))) and bool(jnp.all(jnp.isfinite(q_pred)))
    assert bool(jnp.all(jnp.isfinite(q_pred2))) and bool(jnp.all(jnp.isfinite(obs_emb2)))

    print("KERNEL_OK")
</pallas_src>

<mosaic_0001>
module attributes {stable_mosaic.version = 11 : i64} {
  func.func @_vpt_forward_kernel(%arg0: memref<8x1024xf32, #tpu.memory_space<vmem>>, %arg1: memref<8x1xf32, #tpu.memory_space<vmem>>, %arg2: memref<8x128xf32, #tpu.memory_space<vmem>>, %arg3: memref<1024x128xbf16, #tpu.memory_space<vmem>>, %arg4: memref<1x128xf32, #tpu.memory_space<vmem>>, %arg5: memref<256x128xbf16, #tpu.memory_space<vmem>>, %arg6: memref<1x128xf32, #tpu.memory_space<vmem>>, %arg7: memref<128x256xbf16, #tpu.memory_space<vmem>>, %arg8: memref<1x256xf32, #tpu.memory_space<vmem>>, %arg9: memref<256x128xbf16, #tpu.memory_space<vmem>>, %arg10: memref<1x128xf32, #tpu.memory_space<vmem>>, %arg11: memref<8x128xf32, #tpu.memory_space<vmem>>, %arg12: memref<8x256xf32, #tpu.memory_space<vmem>>, %arg13: memref<8x128xf32, #tpu.memory_space<vmem>>) attributes {dimension_semantics = [], scalar_prefetch = 0 : i64, scratch_operands = 0 : i64, tpu.core_type = #tpu.core_type<tc>} {
    %c0 = arith.constant 0 : index
    %c0_0 = arith.constant 0 : index
    %0 = vector.load %arg0[%c0, %c0_0] : memref<8x1024xf32, #tpu.memory_space<vmem>>, vector<8x1024xf32>
    %1 = arith.truncf %0 : vector<8x1024xf32> to vector<8x1024xbf16>
    %c0_1 = arith.constant 0 : index
    %c0_2 = arith.constant 0 : index
    %2 = vector.load %arg3[%c0_1, %c0_2] : memref<1024x128xbf16, #tpu.memory_space<vmem>>, vector<1024x128xbf16>
    %cst = arith.constant dense<0.000000e+00> : vector<8x128xf32>
    %3 = tpu.matmul %1, %2, %cst {dimension_numbers = #tpu.dot_dimension_numbers<[1], [0], [0], [1], [0, 0, 1, 1], [], []>} : vector<8x1024xbf16>, vector<1024x128xbf16>, vector<8x128xf32> -> vector<8x128xf32>
    %c0_3 = arith.constant 0 : index
    %c0_4 = arith.constant 0 : index
    %4 = vector.load %arg4[%c0_3, %c0_4] : memref<1x128xf32, #tpu.memory_space<vmem>>, vector<1x128xf32>
    %5 = vector.broadcast %4 : vector<1x128xf32> to vector<8x128xf32>
    %6 = arith.addf %3, %5 : vector<8x128xf32>
    %cst_5 = arith.constant 0.000000e+00 : f32
    %7 = vector.broadcast %cst_5 : f32 to vector<8x128xf32>
    %8 = arith.maximumf %6, %7 : vector<8x128xf32>
    %c0_6 = arith.constant 0 : index
    %c0_7 = arith.constant 0 : index
    %9 = vector.load %arg2[%c0_6, %c0_7] : memref<8x128xf32, #tpu.memory_space<vmem>>, vector<8x128xf32>
    %c0_8 = arith.constant 0 : index
    %c0_9 = arith.constant 0 : index
    %10 = vector.load %arg1[%c0_8, %c0_9] : memref<8x1xf32, #tpu.memory_space<vmem>>, vector<8x1xf32>
    %cst_10 = arith.constant 1.000000e+00 : f32
    %11 = vector.broadcast %cst_10 : f32 to vector<8x1xf32>
    %12 = arith.subf %11, %10 : vector<8x1xf32>
    %13 = vector.broadcast %12 : vector<8x1xf32> to vector<8x128xf32>
    %14 = arith.mulf %9, %13 : vector<8x128xf32>
    %15 = tpu.concatenate %8, %14 in 1 : vector<8x128xf32>, vector<8x128xf32> -> vector<8x256xf32>
    %16 = arith.truncf %15 : vector<8x256xf32> to vector<8x256xbf16>
    %c0_11 = arith.constant 0 : index
    %c0_12 = arith.constant 0 : index
    %17 = vector.load %arg5[%c0_11, %c0_12] : memref<256x128xbf16, #tpu.memory_space<vmem>>, vector<256x128xbf16>
    %cst_13 = arith.constant dense<0.000000e+00> : vector<8x128xf32>
    %18 = tpu.matmul %16, %17, %cst_13 {dimension_numbers = #tpu.dot_dimension_numbers<[1], [0], [0], [1], [0, 0, 1, 1], [], []>} : vector<8x256xbf16>, vector<256x128xbf16>, vector<8x128xf32> -> vector<8x128xf32>
    %c0_14 = arith.constant 0 : index
    %c0_15 = arith.constant 0 : index
    %19 = vector.load %arg6[%c0_14, %c0_15] : memref<1x128xf32, #tpu.memory_space<vmem>>, vector<1x128xf32>
    %20 = vector.broadcast %19 : vector<1x128xf32> to vector<8x128xf32>
    %21 = arith.addf %18, %20 : vector<8x128xf32>
    %22 = math.tanh %21 : vector<8x128xf32>
    %23 = arith.truncf %22 : vector<8x128xf32> to vector<8x128xbf16>
    %c0_16 = arith.constant 0 : index
    %c0_17 = arith.constant 0 : index
    %24 = vector.load %arg7[%c0_16, %c0_17] : memref<128x256xbf16, #tpu.memory_space<vmem>>, vector<128x256xbf16>
    %cst_18 = arith.constant dense<0.000000e+00> : vector<8x256xf32>
    %25 = tpu.matmul %23, %24, %cst_18 {dimension_numbers = #tpu.dot_dimension_numbers<[1], [0], [0], [1], [0, 0, 1, 1], [], []>} : vector<8x128xbf16>, vector<128x256xbf16>, vector<8x256xf32> -> vector<8x256xf32>
    %c0_19 = arith.constant 0 : index
    %c0_20 = arith.constant 0 : index
    %26 = vector.load %arg8[%c0_19, %c0_20] : memref<1x256xf32, #tpu.memory_space<vmem>>, vector<1x256xf32>
    %27 = vector.broadcast %26 : vector<1x256xf32> to vector<8x256xf32>
    %28 = arith.addf %25, %27 : vector<8x256xf32>
    %cst_21 = arith.constant 0.000000e+00 : f32
    %29 = vector.broadcast %cst_21 : f32 to vector<8x256xf32>
    %30 = arith.maximumf %28, %29 : vector<8x256xf32>
    %31 = arith.truncf %30 : vector<8x256xf32> to vector<8x256xbf16>
    %c0_22 = arith.constant 0 : index
    %c0_23 = arith.constant 0 : index
    %32 = vector.load %arg9[%c0_22, %c0_23] : memref<256x128xbf16, #tpu.memory_space<vmem>>, vector<256x128xbf16>
    %cst_24 = arith.constant dense<0.000000e+00> : vector<8x128xf32>
    %33 = tpu.matmul %31, %32, %cst_24 {dimension_numbers = #tpu.dot_dimension_numbers<[1], [0], [0], [1], [0, 0, 1, 1], [], []>} : vector<8x256xbf16>, vector<256x128xbf16>, vector<8x128xf32> -> vector<8x128xf32>
    %c0_25 = arith.constant 0 : index
    %c0_26 = arith.constant 0 : index
    %34 = vector.load %arg10[%c0_25, %c0_26] : memref<1x128xf32, #tpu.memory_space<vmem>>, vector<1x128xf32>
    %35 = vector.broadcast %34 : vector<1x128xf32> to vector<8x128xf32>
    %36 = arith.addf %33, %35 : vector<8x128xf32>
    %c0_27 = arith.constant 0 : index
    %c0_28 = arith.constant 0 : index
    %37 = vector.load %arg11[%c0_27, %c0_28] : memref<8x128xf32, #tpu.memory_space<vmem>>, vector<8x128xf32>
    tpu.vector_store %arg11[%c0_27, %c0_28], %36 {strides = array<i32>} : memref<8x128xf32, #tpu.memory_space<vmem>>, vector<8x128xf32>,
    %c0_29 = arith.constant 0 : index
    %c0_30 = arith.constant 0 : index
    %38 = vector.load %arg12[%c0_29, %c0_30] : memref<8x256xf32, #tpu.memory_space<vmem>>, vector<8x256xf32>
    tpu.vector_store %arg12[%c0_29, %c0_30], %30 {strides = array<i32>} : memref<8x256xf32, #tpu.memory_space<vmem>>, vector<8x256xf32>,
    %c0_31 = arith.constant 0 : index
    %c0_32 = arith.constant 0 : index
    %39 = vector.load %arg13[%c0_31, %c0_32] : memref<8x128xf32, #tpu.memory_space<vmem>>, vector<8x128xf32>
    tpu.vector_store %arg13[%c0_31, %c0_32], %22 {strides = array<i32>} : memref<8x128xf32, #tpu.memory_space<vmem>>, vector<8x128xf32>,
    return
  }
}

</mosaic_0001>

<llo_original>
// kernel: vpt_forward_pallas.1
$region0: #{vpt_forward_pallas.1}
  #allocation0 [shape = 'u32[]', space=smem, size = 0x4, offset = 0x4, fixed_abs, tag = 'smem constant byte address 0x4 - core index']
  #allocation1 [shape = 'u32[144,128]{1,0:T(1,128)}', space=vmem, size = 0x12000, scoped, tag = 'internal scratch']
  %s0 = inlined_call_operand.vmem [shape: f32[8,1024], index: 0, kind: input, shape index: {}]
  %s1 = inlined_call_operand.vmem [shape: f32[8,1], index: 1, kind: input, shape index: {}]
  %s2 = inlined_call_operand.vmem [shape: f32[8,128], index: 2, kind: input, shape index: {}]
  %s3 = inlined_call_operand.hbm [shape: bf16[1024,128], index: 3, kind: input, shape index: {}]
  %s4 = inlined_call_operand.vmem [shape: f32[1,128], index: 4, kind: input, shape index: {}]
  %s5 = inlined_call_operand.vmem [shape: bf16[256,128], index: 5, kind: input, shape index: {}]
  %s6 = inlined_call_operand.vmem [shape: f32[1,128], index: 6, kind: input, shape index: {}]
  %s7 = inlined_call_operand.hbm [shape: bf16[128,256], index: 7, kind: input, shape index: {}]
  %s8 = inlined_call_operand.vmem [shape: f32[1,256], index: 8, kind: input, shape index: {}]
  %s9 = inlined_call_operand.hbm [shape: bf16[256,128], index: 9, kind: input, shape index: {}]
  %s10 = inlined_call_operand.vmem [shape: f32[1,128], index: 10, kind: input, shape index: {}]
  %s11 = inlined_call_operand.vmem [shape: f32[8,128], index: 11, kind: output, shape index: {0}]
  %s12 = inlined_call_operand.vmem [shape: f32[8,256], index: 12, kind: output, shape index: {1}]
  %s13 = inlined_call_operand.vmem [shape: f32[8,128], index: 13, kind: output, shape index: {2}]
  %14 = xla_tuple %s11, %s12, %s13
  %s15 = sld [smem:[#allocation0]]
  $region82: #{vpt_forward_pallas.1} parent=0
    _
  %s17 = ssub.s32 1, %s15
  %s18 = scalar_select 0, %s17, %s15
  $region1: #{vpt_forward_pallas.1} parent=0
    #allocation2 [shape = 'u8[262144]{0}', space=vmem, size = 0x40000, scoped, tag = 'input window, operand 3, single buffered']
    #allocation3 [shape = 's32[1]{0}', space=sflag, size = 0x4, scoped, tag = 'scoped memory for vpt_forward_pallas.1']
    #allocation4 [shape = 'u8[65536]{0}', space=vmem, size = 0x10000, scoped, tag = 'input window, operand 7, single buffered']
    #allocation5 [shape = 's32[1]{0}', space=sflag, size = 0x4, scoped, tag = 'scoped memory for vpt_forward_pallas.1']
    #allocation6 [shape = 'u8[65536]{0}', space=vmem, size = 0x10000, scoped, tag = 'input window, operand 9, single buffered']
    %19 = vsyncpa [#allocation3], 0
    %20 = vsyncpa [#allocation5], 0
    // Predicated region
    $region2: #{vpt_forward_pallas.1} parent=1 // pred_check
      _
    $region3: #{vpt_forward_pallas.1} parent=1 // pred_check_branch
      %22 = sbr.rel (0) target = $region5
    $region4: #{vpt_forward_pallas.1} parent=1 // pred_region
      _
    $region5: #{vpt_forward_pallas.1} parent=1 // pred_fallthru
      _
    // Predicated region
    $region6: #{vpt_forward_pallas.1} parent=1 // pred_check
      _
    $region7: #{vpt_forward_pallas.1} parent=1 // pred_check_branch
      %24 = sbr.rel (0) target = $region9
    $region8: #{vpt_forward_pallas.1} parent=1 // pred_region
      _
    $region9: #{vpt_forward_pallas.1} parent=1 // pred_fallthru
      _
    // Predicated region
    $region10: #{vpt_forward_pallas.1} parent=1 // pred_check
      _
    $region11: #{vpt_forward_pallas.1} parent=1 // pred_check_branch
      %26 = sbr.rel (0) target = $region13
    $region12: #{vpt_forward_pallas.1} parent=1 // pred_region
      _
    $region13: #{vpt_forward_pallas.1} parent=1 // pred_fallthru
      _
    // Predicated region
    $region14: #{vpt_forward_pallas.1} parent=1 // pred_check
      _
    $region15: #{vpt_forward_pallas.1} parent=1 // pred_check_branch
      %28 = sbr.rel (0) target = $region17
    $region16: #{vpt_forward_pallas.1} parent=1 // pred_region
      %s30 = ssub.s32 8192, 8192
      %31 = vsyncadd [#allocation3], %s30
      %s32 = sshll.u32 [#allocation2], 4
      %s33 = int_to_ptr.vmem [resolvable:$true] %s32
      %38 = dma.hbm_to_vmem [thread:$0]  %s3, 8192, %s33, [#allocation3], 64, 64, 4
    $region17: #{vpt_forward_pallas.1} parent=1 // pred_fallthru
      _
    // Predicated region
    $region18: #{vpt_forward_pallas.1} parent=1 // pred_check
      _
    $region19: #{vpt_forward_pallas.1} parent=1 // pred_check_branch
      %40 = sbr.rel (0) target = $region21
    $region20: #{vpt_forward_pallas.1} parent=1 // pred_region
      _
    $region21: #{vpt_forward_pallas.1} parent=1 // pred_fallthru
      _
    // Predicated region
    $region22: #{vpt_forward_pallas.1} parent=1 // pred_check
      _
    $region23: #{vpt_forward_pallas.1} parent=1 // pred_check_branch
      %42 = sbr.rel (0) target = $region25
    $region24: #{vpt_forward_pallas.1} parent=1 // pred_region
      _
    $region25: #{vpt_forward_pallas.1} parent=1 // pred_fallthru
      _
    // Predicated region
    $region26: #{vpt_forward_pallas.1} parent=1 // pred_check
      _
    $region27: #{vpt_forward_pallas.1} parent=1 // pred_check_branch
      %44 = sbr.rel (0) target = $region29
    $region28: #{vpt_forward_pallas.1} parent=1 // pred_region
      _
    $region29: #{vpt_forward_pallas.1} parent=1 // pred_fallthru
      _
    // Predicated region
    $region30: #{vpt_forward_pallas.1} parent=1 // pred_check
      _
    $region31: #{vpt_forward_pallas.1} parent=1 // pred_check_branch
      %46 = sbr.rel (0) target = $region33
    $region32: #{vpt_forward_pallas.1} parent=1 // pred_region
      %s48 = ssub.s32 2048, 2048
      %49 = vsyncadd [#allocation5], %s48
      %s50 = sshll.u32 [#allocation4], 4
      %s51 = int_to_ptr.vmem [resolvable:$true] %s50
      %56 = dma.hbm_to_vmem [thread:$0]  %s7, 2048, %s51, [#allocation5], 128, 128, 8
    $region33: #{vpt_forward_pallas.1} parent=1 // pred_fallthru
      _
    // Predicated region
    $region34: #{vpt_forward_pallas.1} parent=1 // pred_check
      _
    $region35: #{vpt_forward_pallas.1} parent=1 // pred_check_branch
      %58 = sbr.rel (0) target = $region37
    $region36: #{vpt_forward_pallas.1} parent=1 // pred_region
      _
    $region37: #{vpt_forward_pallas.1} parent=1 // pred_fallthru
      _
    // Predicated region
    $region38: #{vpt_forward_pallas.1} parent=1 // pred_check
      _
    $region39: #{vpt_forward_pallas.1} parent=1 // pred_check_branch
      %60 = sbr.rel (0) target = $region41
    $region40: #{vpt_forward_pallas.1} parent=1 // pred_region
      %s62 = ssub.s32 2048, 2048
      %63 = vsyncadd [#allocation5], %s62
      %s64 = sshll.u32 [#allocation6], 4
      %s65 = int_to_ptr.vmem [resolvable:$true] %s64
      %70 = dma.hbm_to_vmem [thread:$0]  %s9, 2048, %s65, [#allocation5], 64, 64, 4
    $region41: #{vpt_forward_pallas.1} parent=1 // pred_fallthru
      _
    // Predicated region
    $region42: #{vpt_forward_pallas.1} parent=1 // pred_check
      _
    $region43: #{vpt_forward_pallas.1} parent=1 // pred_check_branch
      %72 = sbr.rel (0) target = $region45
    $region44: #{vpt_forward_pallas.1} parent=1 // pred_region
      _
    $region45: #{vpt_forward_pallas.1} parent=1 // pred_fallthru
      _
    // Predicated region
    $region46: #{vpt_forward_pallas.1} parent=1 // pred_check
      _
    $region47: #{vpt_forward_pallas.1} parent=1 // pred_check_branch
      %74 = sbr.rel (0) target = $region49
    $region48: #{vpt_forward_pallas.1} parent=1 // pred_region
      %75 = dma.done [#allocation3], 8192
    $region49: #{vpt_forward_pallas.1} parent=1 // pred_fallthru
      _
    // Predicated region
    $region50: #{vpt_forward_pallas.1} parent=1 // pred_check
      _
    $region51: #{vpt_forward_pallas.1} parent=1 // pred_check_branch
      %77 = sbr.rel (0) target = $region53
    $region52: #{vpt_forward_pallas.1} parent=1 // pred_region
      %78 = dma.done [#allocation5], 2048
    $region53: #{vpt_forward_pallas.1} parent=1 // pred_fallthru
      _
    // Predicated region
    $region54: #{vpt_forward_pallas.1} parent=1 // pred_check
      _
    $region55: #{vpt_forward_pallas.1} parent=1 // pred_check_branch
      %80 = sbr.rel (0) target = $region57
    $region56: #{vpt_forward_pallas.1} parent=1 // pred_region
      %81 = dma.done [#allocation5], 2048
    $region57: #{vpt_forward_pallas.1} parent=1 // pred_fallthru
      _
    %v83 = vld [vmem:[%s0] sm:$0xff]
    %v84 = vld [vmem:[%s0 + $0x8] sm:$0xff]
    %v85 = vld [vmem:[%s0 + $0x10] sm:$0xff]
    %v86 = vld [vmem:[%s0 + $0x18] sm:$0xff]
    %v87 = vld [vmem:[%s0 + $0x20] sm:$0xff]
    %v88 = vld [vmem:[%s0 + $0x28] sm:$0xff]
    %v89 = vld [vmem:[%s0 + $0x30] sm:$0xff]
    %v90 = vld [vmem:[%s0 + $0x38] sm:$0xff]
    %v91 = vpack.c.bf16 %v83, %v83
    %v92 = vpack.c.bf16 %v84, %v84
    %v93 = vpack.c.bf16 %v85, %v85
    %v94 = vpack.c.bf16 %v86, %v86
    %v95 = vpack.c.bf16 %v87, %v87
    %v96 = vpack.c.bf16 %v88, %v88
    %v97 = vpack.c.bf16 %v89, %v89
    %v98 = vpack.c.bf16 %v90, %v90
    %v99 = vld [vmem:[#allocation2] sm:$0xf]
    %v100 = vld [vmem:[#allocation2 + $0x4] sm:$0xf]
    %v101 = vld [vmem:[#allocation2 + $0x8] sm:$0xf]
    %v102 = vld [vmem:[#allocation2 + $0xc] sm:$0xf]
    %v103 = vld [vmem:[#allocation2 + $0x10] sm:$0xf]
    %v104 = vld [vmem:[#allocation2 + $0x14] sm:$0xf]
    %v105 = vld [vmem:[#allocation2 + $0x18] sm:$0xf]
    %v106 = vld [vmem:[#allocation2 + $0x1c] sm:$0xf]
    %v107 = vld [vmem:[#allocation2 + $0x20] sm:$0xf]
    %v108 = vld [vmem:[#allocation2 + $0x24] sm:$0xf]
    %v109 = vld [vmem:[#allocation2 + $0x28] sm:$0xf]
    %v110 = vld [vmem:[#allocation2 + $0x2c] sm:$0xf]
    %v111 = vld [vmem:[#allocation2 + $0x30] sm:$0xf]
    %v112 = vld [vmem:[#allocation2 + $0x34] sm:$0xf]
    %v113 = vld [vmem:[#allocation2 + $0x38] sm:$0xf]
    %v114 = vld [vmem:[#allocation2 + $0x3c] sm:$0xf]
    %v115 = vld [vmem:[#allocation2 + $0x40] sm:$0xf]
    %v116 = vld [vmem:[#allocation2 + $0x44] sm:$0xf]
    %v117 = vld [vmem:[#allocation2 + $0x48] sm:$0xf]
    %v118 = vld [vmem:[#allocation2 + $0x4c] sm:$0xf]
    %v119 = vld [vmem:[#allocation2 + $0x50] sm:$0xf]
    %v120 = vld [vmem:[#allocation2 + $0x54] sm:$0xf]
    %v121 = vld [vmem:[#allocation2 + $0x58] sm:$0xf]
    %v122 = vld [vmem:[#allocation2 + $0x5c] sm:$0xf]
    %v123 = vld [vmem:[#allocation2 + $0x60] sm:$0xf]
    %v124 = vld [vmem:[#allocation2 + $0x64] sm:$0xf]
    %v125 = vld [vmem:[#allocation2 + $0x68] sm:$0xf]
    %v126 = vld [vmem:[#allocation2 + $0x6c] sm:$0xf]
    %v127 = vld [vmem:[#allocation2 + $0x70] sm:$0xf]
    %v128 = vld [vmem:[#allocation2 + $0x74] sm:$0xf]
    %v129 = vld [vmem:[#allocation2 + $0x78] sm:$0xf]
    %v130 = vld [vmem:[#allocation2 + $0x7c] sm:$0xf]
    %v131 = vld [vmem:[#allocation2 + $0x80] sm:$0xf]
    %v132 = vld [vmem:[#allocation2 + $0x84] sm:$0xf]
    %v133 = vld [vmem:[#allocation2 + $0x88] sm:$0xf]
    %v134 = vld [vmem:[#allocation2 + $0x8c] sm:$0xf]
    %v135 = vld [vmem:[#allocation2 + $0x90] sm:$0xf]
    %v136 = vld [vmem:[#allocation2 + $0x94] sm:$0xf]
    %v137 = vld [vmem:[#allocation2 + $0x98] sm:$0xf]
    %v138 = vld [vmem:[#allocation2 + $0x9c] sm:$0xf]
    %v139 = vld [vmem:[#allocation2 + $0xa0] sm:$0xf]
    %v140 = vld [vmem:[#allocation2 + $0xa4] sm:$0xf]
    %v141 = vld [vmem:[#allocation2 + $0xa8] sm:$0xf]
    %v142 = vld [vmem:[#allocation2 + $0xac] sm:$0xf]
    %v143 = vld [vmem:[#allocation2 + $0xb0] sm:$0xf]
    %v144 = vld [vmem:[#allocation2 + $0xb4] sm:$0xf]
    %v145 = vld [vmem:[#allocation2 + $0xb8] sm:$0xf]
    %v146 = vld [vmem:[#allocation2 + $0xbc] sm:$0xf]
    %v147 = vld [vmem:[#allocation2 + $0xc0] sm:$0xf]
    %v148 = vld [vmem:[#allocation2 + $0xc4] sm:$0xf]
    %v149 = vld [vmem:[#allocation2 + $0xc8] sm:$0xf]
    %v150 = vld [vmem:[#allocation2 + $0xcc] sm:$0xf]
    %v151 = vld [vmem:[#allocation2 + $0xd0] sm:$0xf]
    %v152 = vld [vmem:[#allocation2 + $0xd4] sm:$0xf]
    %v153 = vld [vmem:[#allocation2 + $0xd8] sm:$0xf]
    %v154 = vld [vmem:[#allocation2 + $0xdc] sm:$0xf]
    %v155 = vld [vmem:[#allocation2 + $0xe0] sm:$0xf]
    %v156 = vld [vmem:[#allocation2 + $0xe4] sm:$0xf]
    %v157 = vld [vmem:[#allocation2 + $0xe8] sm:$0xf]
    %v158 = vld [vmem:[#allocation2 + $0xec] sm:$0xf]
    %v159 = vld [vmem:[#allocation2 + $0xf0] sm:$0xf]
    %v160 = vld [vmem:[#allocation2 + $0xf4] sm:$0xf]
    %v161 = vld [vmem:[#allocation2 + $0xf8] sm:$0xf]
    %v162 = vld [vmem:[#allocation2 + $0xfc] sm:$0xf]
    %v163 = vld [vmem:[#allocation2 + $0x100] sm:$0xf]
    %v164 = vld [vmem:[#allocation2 + $0x104] sm:$0xf]
    %v165 = vld [vmem:[#allocation2 + $0x108] sm:$0xf]
    %v166 = vld [vmem:[#allocation2 + $0x10c] sm:$0xf]
    %v167 = vld [vmem:[#allocation2 + $0x110] sm:$0xf]
    %v168 = vld [vmem:[#allocation2 + $0x114] sm:$0xf]
    %v169 = vld [vmem:[#allocation2 + $0x118] sm:$0xf]
    %v170 = vld [vmem:[#allocation2 + $0x11c] sm:$0xf]
    %v171 = vld [vmem:[#allocation2 + $0x120] sm:$0xf]
    %v172 = vld [vmem:[#allocation2 + $0x124] sm:$0xf]
    %v173 = vld [vmem:[#allocation2 + $0x128] sm:$0xf]
    %v174 = vld [vmem:[#allocation2 + $0x12c] sm:$0xf]
    %v175 = vld [vmem:[#allocation2 + $0x130] sm:$0xf]
    %v176 = vld [vmem:[#allocation2 + $0x134] sm:$0xf]
    %v177 = vld [vmem:[#allocation2 + $0x138] sm:$0xf]
    %v178 = vld [vmem:[#allocation2 + $0x13c] sm:$0xf]
    %v179 = vld [vmem:[#allocation2 + $0x140] sm:$0xf]
    %v180 = vld [vmem:[#allocation2 + $0x144] sm:$0xf]
    %v181 = vld [vmem:[#allocation2 + $0x148] sm:$0xf]
    %v182 = vld [vmem:[#allocation2 + $0x14c] sm:$0xf]
    %v183 = vld [vmem:[#allocation2 + $0x150] sm:$0xf]
    %v184 = vld [vmem:[#allocation2 + $0x154] sm:$0xf]
    %v185 = vld [vmem:[#allocation2 + $0x158] sm:$0xf]
    %v186 = vld [vmem:[#allocation2 + $0x15c] sm:$0xf]
    %v187 = vld [vmem:[#allocation2 + $0x160] sm:$0xf]
    %v188 = vld [vmem:[#allocation2 + $0x164] sm:$0xf]
    %v189 = vld [vmem:[#allocation2 + $0x168] sm:$0xf]
    %v190 = vld [vmem:[#allocation2 + $0x16c] sm:$0xf]
    %v191 = vld [vmem:[#allocation2 + $0x170] sm:$0xf]
    %v192 = vld [vmem:[#allocation2 + $0x174] sm:$0xf]
    %v193 = vld [vmem:[#allocation2 + $0x178] sm:$0xf]
    %v194 = vld [vmem:[#allocation2 + $0x17c] sm:$0xf]
    %v195 = vld [vmem:[#allocation2 + $0x180] sm:$0xf]
    %v196 = vld [vmem:[#allocation2 + $0x184] sm:$0xf]
    %v197 = vld [vmem:[#allocation2 + $0x188] sm:$0xf]
    %v198 = vld [vmem:[#allocation2 + $0x18c] sm:$0xf]
    %v199 = vld [vmem:[#allocation2 + $0x190] sm:$0xf]
    %v200 = vld [vmem:[#allocation2 + $0x194] sm:$0xf]
    %v201 = vld [vmem:[#allocation2 + $0x198] sm:$0xf]
    %v202 = vld [vmem:[#allocation2 + $0x19c] sm:$0xf]
    %v203 = vld [vmem:[#allocation2 + $0x1a0] sm:$0xf]
    %v204 = vld [vmem:[#allocation2 + $0x1a4] sm:$0xf]
    %v205 = vld [vmem:[#allocation2 + $0x1a8] sm:$0xf]
    %v206 = vld [vmem:[#allocation2 + $0x1ac] sm:$0xf]
    %v207 = vld [vmem:[#allocation2 + $0x1b0] sm:$0xf]
    %v208 = vld [vmem:[#allocation2 + $0x1b4] sm:$0xf]
    %v209 = vld [vmem:[#allocation2 + $0x1b8] sm:$0xf]
    %v210 = vld [vmem:[#allocation2 + $0x1bc] sm:$0xf]
    %v211 = vld [vmem:[#allocation2 + $0x1c0] sm:$0xf]
    %v212 = vld [vmem:[#allocation2 + $0x1c4] sm:$0xf]
    %v213 = vld [vmem:[#allocation2 + $0x1c8] sm:$0xf]
    %v214 = vld [vmem:[#allocation2 + $0x1cc] sm:$0xf]
    %v215 = vld [vmem:[#allocation2 + $0x1d0] sm:$0xf]
    %v216 = vld [vmem:[#allocation2 + $0x1d4] sm:$0xf]
    %v217 = vld [vmem:[#allocation2 + $0x1d8] sm:$0xf]
    %v218 = vld [vmem:[#allocation2 + $0x1dc] sm:$0xf]
    %v219 = vld [vmem:[#allocation2 + $0x1e0] sm:$0xf]
    %v220 = vld [vmem:[#allocation2 + $0x1e4] sm:$0xf]
    %v221 = vld [vmem:[#allocation2 + $0x1e8] sm:$0xf]
    %v222 = vld [vmem:[#allocation2 + $0x1ec] sm:$0xf]
    %v223 = vld [vmem:[#allocation2 + $0x1f0] sm:$0xf]
    %v224 = vld [vmem:[#allocation2 + $0x1f4] sm:$0xf]
    %v225 = vld [vmem:[#allocation2 + $0x1f8] sm:$0xf]
    %v226 = vld [vmem:[#allocation2 + $0x1fc] sm:$0xf]
    %v227 = vld [vmem:[%s4] sm:$0x1]
    %v229 = vlaneseq
    %v230 = vshrl.u32 %v229, 7
    %v231 = vsub.s32 0, %v230
    %v232 = vrot.slane %v227, %v231
    %v362 = vunpack.c.l.b16 %v99
    %v363 = vunpack.c.l.b16 %v100
    %v364 = vunpack.c.l.b16 %v101
    %v365 = vunpack.c.l.b16 %v102
    %v366 = vunpack.c.l.b16 %v103
    %v367 = vunpack.c.l.b16 %v104
    %v368 = vunpack.c.l.b16 %v105
    %v369 = vunpack.c.l.b16 %v106
    %v370 = vunpack.c.l.b16 %v107
    %v371 = vunpack.c.l.b16 %v108
    %v372 = vunpack.c.l.b16 %v109
    %v373 = vunpack.c.l.b16 %v110
    %v374 = vunpack.c.l.b16 %v111
    %v375 = vunpack.c.l.b16 %v112
    %v376 = vunpack.c.l.b16 %v113
    %v377 = vunpack.c.l.b16 %v114
    %v378 = vunpack.c.l.b16 %v115
    %v379 = vunpack.c.l.b16 %v116
    %v380 = vunpack.c.l.b16 %v117
    %v381 = vunpack.c.l.b16 %v118
    %v382 = vunpack.c.l.b16 %v119
    %v383 = vunpack.c.l.b16 %v120
    %v384 = vunpack.c.l.b16 %v121
    %v385 = vunpack.c.l.b16 %v122
    %v386 = vunpack.c.l.b16 %v123
    %v387 = vunpack.c.l.b16 %v124
    %v388 = vunpack.c.l.b16 %v125
    %v389 = vunpack.c.l.b16 %v126
    %v390 = vunpack.c.l.b16 %v127
    %v391 = vunpack.c.l.b16 %v128
    %v392 = vunpack.c.l.b16 %v129
    %v393 = vunpack.c.l.b16 %v130
    %v394 = vunpack.c.l.b16 %v131
    %v395 = vunpack.c.l.b16 %v132
    %v396 = vunpack.c.l.b16 %v133
    %v397 = vunpack.c.l.b16 %v134
    %v398 = vunpack.c.l.b16 %v135
    %v399 = vunpack.c.l.b16 %v136
    %v400 = vunpack.c.l.b16 %v137
    %v401 = vunpack.c.l.b16 %v138
    %v402 = vunpack.c.l.b16 %v139
    %v403 = vunpack.c.l.b16 %v140
    %v404 = vunpack.c.l.b16 %v141
    %v405 = vunpack.c.l.b16 %v142
    %v406 = vunpack.c.l.b16 %v143
    %v407 = vunpack.c.l.b16 %v144
    %v408 = vunpack.c.l.b16 %v145
    %v409 = vunpack.c.l.b16 %v146
    %v410 = vunpack.c.l.b16 %v147
    %v411 = vunpack.c.l.b16 %v148
    %v412 = vunpack.c.l.b16 %v149
    %v413 = vunpack.c.l.b16 %v150
    %v414 = vunpack.c.l.b16 %v151
    %v415 = vunpack.c.l.b16 %v152
    %v416 = vunpack.c.l.b16 %v153
    %v417 = vunpack.c.l.b16 %v154
    %v418 = vunpack.c.l.b16 %v155
    %v419 = vunpack.c.l.b16 %v156
    %v420 = vunpack.c.l.b16 %v157
    %v421 = vunpack.c.l.b16 %v158
    %v422 = vunpack.c.l.b16 %v159
    %v423 = vunpack.c.l.b16 %v160
    %v424 = vunpack.c.l.b16 %v161
    %v425 = vunpack.c.l.b16 %v162
    %v426 = vunpack.c.l.b16 %v163
    %v427 = vunpack.c.l.b16 %v164
    %v428 = vunpack.c.l.b16 %v165
    %v429 = vunpack.c.l.b16 %v166
    %v430 = vunpack.c.l.b16 %v167
    %v431 = vunpack.c.l.b16 %v168
    %v432 = vunpack.c.l.b16 %v169
    %v433 = vunpack.c.l.b16 %v170
    %v434 = vunpack.c.l.b16 %v171
    %v435 = vunpack.c.l.b16 %v172
    %v436 = vunpack.c.l.b16 %v173
    %v437 = vunpack.c.l.b16 %v174
    %v438 = vunpack.c.l.b16 %v175
    %v439 = vunpack.c.l.b16 %v176
    %v440 = vunpack.c.l.b16 %v177
    %v441 = vunpack.c.l.b16 %v178
    %v442 = vunpack.c.l.b16 %v179
    %v443 = vunpack.c.l.b16 %v180
    %v444 = vunpack.c.l.b16 %v181
    %v445 = vunpack.c.l.b16 %v182
    %v446 = vunpack.c.l.b16 %v183
    %v447 = vunpack.c.l.b16 %v184
    %v448 = vunpack.c.l.b16 %v185
    %v449 = vunpack.c.l.b16 %v186
    %v450 = vunpack.c.l.b16 %v187
    %v451 = vunpack.c.l.b16 %v188
    %v452 = vunpack.c.l.b16 %v189
    %v453 = vunpack.c.l.b16 %v190
    %v454 = vunpack.c.l.b16 %v191
    %v455 = vunpack.c.l.b16 %v192
    %v456 = vunpack.c.l.b16 %v193
    %v457 = vunpack.c.l.b16 %v194
    %v458 = vunpack.c.l.b16 %v195
    %v459 = vunpack.c.l.b16 %v196
    %v460 = vunpack.c.l.b16 %v197
    %v461 = vunpack.c.l.b16 %v198
    %v462 = vunpack.c.l.b16 %v199
    %v463 = vunpack.c.l.b16 %v200
    %v464 = vunpack.c.l.b16 %v201
    %v465 = vunpack.c.l.b16 %v202
    %v466 = vunpack.c.l.b16 %v203
    %v467 = vunpack.c.l.b16 %v204
    %v468 = vunpack.c.l.b16 %v205
    %v469 = vunpack.c.l.b16 %v206
    %v470 = vunpack.c.l.b16 %v207
    %v471 = vunpack.c.l.b16 %v208
    %v472 = vunpack.c.l.b16 %v209
    %v473 = vunpack.c.l.b16 %v210
    %v474 = vunpack.c.l.b16 %v211
    %v475 = vunpack.c.l.b16 %v212
    %v476 = vunpack.c.l.b16 %v213
    %v477 = vunpack.c.l.b16 %v214
    %v478 = vunpack.c.l.b16 %v215
    %v479 = vunpack.c.l.b16 %v216
    %v480 = vunpack.c.l.b16 %v217
    %v481 = vunpack.c.l.b16 %v218
    %v482 = vunpack.c.l.b16 %v219
    %v483 = vunpack.c.l.b16 %v220
    %v484 = vunpack.c.l.b16 %v221
    %v485 = vunpack.c.l.b16 %v222
    %v486 = vunpack.c.l.b16 %v223
    %v487 = vunpack.c.l.b16 %v224
    %v488 = vunpack.c.l.b16 %v225
    %v489 = vunpack.c.l.b16 %v226
    %v490 = vpack.c.b16 %v363, %v362
    %v491 = vpack.c.b16 %v365, %v364
    %v492 = vpack.c.b16 %v367, %v366
    %v493 = vpack.c.b16 %v369, %v368
    %v494 = vpack.c.b16 %v371, %v370
    %v495 = vpack.c.b16 %v373, %v372
    %v496 = vpack.c.b16 %v375, %v374
    %v497 = vpack.c.b16 %v377, %v376
    %v498 = vpack.c.b16 %v379, %v378
    %v499 = vpack.c.b16 %v381, %v380
    %v500 = vpack.c.b16 %v383, %v382
    %v501 = vpack.c.b16 %v385, %v384
    %v502 = vpack.c.b16 %v387, %v386
    %v503 = vpack.c.b16 %v389, %v388
    %v504 = vpack.c.b16 %v391, %v390
    %v505 = vpack.c.b16 %v393, %v392
    %v506 = vpack.c.b16 %v395, %v394
    %v507 = vpack.c.b16 %v397, %v396
    %v508 = vpack.c.b16 %v399, %v398
    %v509 = vpack.c.b16 %v401, %v400
    %v510 = vpack.c.b16 %v403, %v402
    %v511 = vpack.c.b16 %v405, %v404
    %v512 = vpack.c.b16 %v407, %v406
    %v513 = vpack.c.b16 %v409, %v408
    %v514 = vpack.c.b16 %v411, %v410
    %v515 = vpack.c.b16 %v413, %v412
    %v516 = vpack.c.b16 %v415, %v414
    %v517 = vpack.c.b16 %v417, %v416
    %v518 = vpack.c.b16 %v419, %v418
    %v519 = vpack.c.b16 %v421, %v420
    %v520 = vpack.c.b16 %v423, %v422
    %v521 = vpack.c.b16 %v425, %v424
    %v522 = vpack.c.b16 %v427, %v426
    %v523 = vpack.c.b16 %v429, %v428
    %v524 = vpack.c.b16 %v431, %v430
    %v525 = vpack.c.b16 %v433, %v432
    %v526 = vpack.c.b16 %v435, %v434
    %v527 = vpack.c.b16 %v437, %v436
    %v528 = vpack.c.b16 %v439, %v438
    %v529 = vpack.c.b16 %v441, %v440
    %v530 = vpack.c.b16 %v443, %v442
    %v531 = vpack.c.b16 %v445, %v444
    %v532 = vpack.c.b16 %v447, %v446
    %v533 = vpack.c.b16 %v449, %v448
    %v534 = vpack.c.b16 %v451, %v450
    %v535 = vpack.c.b16 %v453, %v452
    %v536 = vpack.c.b16 %v455, %v454
    %v537 = vpack.c.b16 %v457, %v456
    %v538 = vpack.c.b16 %v459, %v458
    %v539 = vpack.c.b16 %v461, %v460
    %v540 = vpack.c.b16 %v463, %v462
    %v541 = vpack.c.b16 %v465, %v464
    %v542 = vpack.c.b16 %v467, %v466
    %v543 = vpack.c.b16 %v469, %v468
    %v544 = vpack.c.b16 %v471, %v470
    %v545 = vpack.c.b16 %v473, %v472
    %v546 = vpack.c.b16 %v475, %v474
    %v547 = vpack.c.b16 %v477, %v476
    %v548 = vpack.c.b16 %v479, %v478
    %v549 = vpack.c.b16 %v481, %v480
    %v550 = vpack.c.b16 %v483, %v482
    %v551 = vpack.c.b16 %v485, %v484
    %v552 = vpack.c.b16 %v487, %v486
    %v553 = vpack.c.b16 %v489, %v488
    %618 = vmatprep.subr.bf16.mxu0 0
    %619 = vmatpush1.bf16.msra.mxu0 %v490
    %620 = vmatprep.subr.bf16.mxu0 0
    %621 = vmatpush1.bf16.msra.mxu0 %v491
    %622 = vmatprep.subr.bf16.mxu0 0
    %623 = vmatpush1.bf16.msra.mxu0 %v492
    %624 = vmatprep.subr.bf16.mxu0 0
    %625 = vmatpush1.bf16.msra.mxu0 %v493
    %626 = vmatprep.subr.bf16.mxu0 0
    %627 = vmatpush1.bf16.msra.mxu0 %v494
    %628 = vmatprep.subr.bf16.mxu0 0
    %629 = vmatpush1.bf16.msra.mxu0 %v495
    %630 = vmatprep.subr.bf16.mxu0 0
    %631 = vmatpush1.bf16.msra.mxu0 %v496
    %632 = vmatprep.subr.bf16.mxu0 0
    %633 = vmatpush1.bf16.msra.mxu0 %v497
    %634 = vmatprep.subr.bf16.mxu0 0
    %635 = vmatpush1.bf16.msra.mxu0 %v498
    %636 = vmatprep.subr.bf16.mxu0 0
    %637 = vmatpush1.bf16.msra.mxu0 %v499
    %638 = vmatprep.subr.bf16.mxu0 0
    %639 = vmatpush1.bf16.msra.mxu0 %v500
    %640 = vmatprep.subr.bf16.mxu0 0
    %641 = vmatpush1.bf16.msra.mxu0 %v501
    %642 = vmatprep.subr.bf16.mxu0 0
    %643 = vmatpush1.bf16.msra.mxu0 %v502
    %644 = vmatprep.subr.bf16.mxu0 0
    %645 = vmatpush1.bf16.msra.mxu0 %v503
    %646 = vmatprep.subr.bf16.mxu0 0
    %647 = vmatpush1.bf16.msra.mxu0 %v504
    %648 = vmatprep.subr.bf16.mxu0 0
    %649 = vmatpush1.bf16.msra.mxu0 %v505
    %650 = vmatprep.mubr.bf16.mxu0 %v92
    %651 = vmatmul.mubr.bf16.gmra.mrb[0].mxu0 %v91
    %v652 = vpop.f32.mrb[0].mxu0
    %v653 = vadd.f32 %v232, %v652
    %v654 = vpop.f32.mrb[0].mxu0
    %v655 = vpop.f32.mrb[0].mxu0
    %v656 = vpop.f32.mrb[0].mxu0
    %657 = vdwg.mxu0
    %658 = vmatprep.subr.bf16.mxu0 0
    %659 = vmatpush1.bf16.msra.mxu0 %v506
    %660 = vmatprep.subr.bf16.mxu0 0
    %661 = vmatpush1.bf16.msra.mxu0 %v507
    %662 = vmatprep.subr.bf16.mxu0 0
    %663 = vmatpush1.bf16.msra.mxu0 %v508
    %664 = vmatprep.subr.bf16.mxu0 0
    %665 = vmatpush1.bf16.msra.mxu0 %v509
    %666 = vmatprep.subr.bf16.mxu0 0
    %667 = vmatpush1.bf16.msra.mxu0 %v510
    %668 = vmatprep.subr.bf16.mxu0 0
    %669 = vmatpush1.bf16.msra.mxu0 %v511
    %670 = vmatprep.subr.bf16.mxu0 0
    %671 = vmatpush1.bf16.msra.mxu0 %v512
    %672 = vmatprep.subr.bf16.mxu0 0
    %673 = vmatpush1.bf16.msra.mxu0 %v513
    %674 = vmatprep.subr.bf16.mxu0 0
    %675 = vmatpush1.bf16.msra.mxu0 %v514
    %676 = vmatprep.subr.bf16.mxu0 0
    %677 = vmatpush1.bf16.msra.mxu0 %v515
    %678 = vmatprep.subr.bf16.mxu0 0
    %679 = vmatpush1.bf16.msra.mxu0 %v516
    %680 = vmatprep.subr.bf16.mxu0 0
    %681 = vmatpush1.bf16.msra.mxu0 %v517
    %682 = vmatprep.subr.bf16.mxu0 0
    %683 = vmatpush1.bf16.msra.mxu0 %v518
    %684 = vmatprep.subr.bf16.mxu0 0
    %685 = vmatpush1.bf16.msra.mxu0 %v519
    %686 = vmatprep.subr.bf16.mxu0 0
    %687 = vmatpush1.bf16.msra.mxu0 %v520
    %688 = vmatprep.subr.bf16.mxu0 0
    %689 = vmatpush1.bf16.msra.mxu0 %v521
    %690 = vmatprep.mubr.bf16.mxu0 %v94
    %691 = vmatmul.mubr.bf16.gmra.mrb[0].mxu0 %v93
    %v692 = vpop.f32.mrb[0].mxu0
    %v693 = vadd.f32 %v653, %v692
    %v694 = vpop.f32.mrb[0].mxu0
    %v695 = vpop.f32.mrb[0].mxu0
    %v696 = vpop.f32.mrb[0].mxu0
    %697 = vdwg.mxu0
    %698 = vmatprep.subr.bf16.mxu0 0
    %699 = vmatpush1.bf16.msra.mxu0 %v522
    %700 = vmatprep.subr.bf16.mxu0 0
    %701 = vmatpush1.bf16.msra.mxu0 %v523
    %702 = vmatprep.subr.bf16.mxu0 0
    %703 = vmatpush1.bf16.msra.mxu0 %v524
    %704 = vmatprep.subr.bf16.mxu0 0
    %705 = vmatpush1.bf16.msra.mxu0 %v525
    %706 = vmatprep.subr.bf16.mxu0 0
    %707 = vmatpush1.bf16.msra.mxu0 %v526
    %708 = vmatprep.subr.bf16.mxu0 0
    %709 = vmatpush1.bf16.msra.mxu0 %v527
    %710 = vmatprep.subr.bf16.mxu0 0
    %711 = vmatpush1.bf16.msra.mxu0 %v528
    %712 = vmatprep.subr.bf16.mxu0 0
    %713 = vmatpush1.bf16.msra.mxu0 %v529
    %714 = vmatprep.subr.bf16.mxu0 0
    %715 = vmatpush1.bf16.msra.mxu0 %v530
    %716 = vmatprep.subr.bf16.mxu0 0
    %717 = vmatpush1.bf16.msra.mxu0 %v531
    %718 = vmatprep.subr.bf16.mxu0 0
    %719 = vmatpush1.bf16.msra.mxu0 %v532
    %720 = vmatprep.subr.bf16.mxu0 0
    %721 = vmatpush1.bf16.msra.mxu0 %v533
    %722 = vmatprep.subr.bf16.mxu0 0
    %723 = vmatpush1.bf16.msra.mxu0 %v534
    %724 = vmatprep.subr.bf16.mxu0 0
    %725 = vmatpush1.bf16.msra.mxu0 %v535
    %726 = vmatprep.subr.bf16.mxu0 0
    %727 = vmatpush1.bf16.msra.mxu0 %v536
    %728 = vmatprep.subr.bf16.mxu0 0
    %729 = vmatpush1.bf16.msra.mxu0 %v537
    %730 = vmatprep.mubr.bf16.mxu0 %v96
    %731 = vmatmul.mubr.bf16.gmra.mrb[0].mxu0 %v95
    %v732 = vpop.f32.mrb[0].mxu0
    %v733 = vadd.f32 %v693, %v732
    %v734 = vpop.f32.mrb[0].mxu0
    %v735 = vpop.f32.mrb[0].mxu0
    %v736 = vpop.f32.mrb[0].mxu0
    %737 = vdwg.mxu0
    %738 = vmatprep.subr.bf16.mxu0 0
    %739 = vmatpush1.bf16.msra.mxu0 %v538
    %740 = vmatprep.subr.bf16.mxu0 0
    %741 = vmatpush1.bf16.msra.mxu0 %v539
    %742 = vmatprep.subr.bf16.mxu0 0
    %743 = vmatpush1.bf16.msra.mxu0 %v540
    %744 = vmatprep.subr.bf16.mxu0 0
    %745 = vmatpush1.bf16.msra.mxu0 %v541
    %746 = vmatprep.subr.bf16.mxu0 0
    %747 = vmatpush1.bf16.msra.mxu0 %v542
    %748 = vmatprep.subr.bf16.mxu0 0
    %749 = vmatpush1.bf16.msra.mxu0 %v543
    %750 = vmatprep.subr.bf16.mxu0 0
    %751 = vmatpush1.bf16.msra.mxu0 %v544
    %752 = vmatprep.subr.bf16.mxu0 0
    %753 = vmatpush1.bf16.msra.mxu0 %v545
    %754 = vmatprep.subr.bf16.mxu0 0
    %755 = vmatpush1.bf16.msra.mxu0 %v546
    %756 = vmatprep.subr.bf16.mxu0 0
    %757 = vmatpush1.bf16.msra.mxu0 %v547
    %758 = vmatprep.subr.bf16.mxu0 0
    %759 = vmatpush1.bf16.msra.mxu0 %v548
    %760 = vmatprep.subr.bf16.mxu0 0
    %761 = vmatpush1.bf16.msra.mxu0 %v549
    %762 = vmatprep.subr.bf16.mxu0 0
    %763 = vmatpush1.bf16.msra.mxu0 %v550
    %764 = vmatprep.subr.bf16.mxu0 0
    %765 = vmatpush1.bf16.msra.mxu0 %v551
    %766 = vmatprep.subr.bf16.mxu0 0
    %767 = vmatpush1.bf16.msra.mxu0 %v552
    %768 = vmatprep.subr.bf16.mxu0 0
    %769 = vmatpush1.bf16.msra.mxu0 %v553
    %770 = vmatprep.mubr.bf16.mxu0 %v98
    %771 = vmatmul.mubr.bf16.gmra.mrb[0].mxu0 %v97
    %v772 = vpop.f32.mrb[0].mxu0
    %v773 = vadd.f32 %v733, %v772
    %v774 = vpop.f32.mrb[0].mxu0
    %v775 = vpop.f32.mrb[0].mxu0
    %v776 = vpop.f32.mrb[0].mxu0
    %777 = vdwg.mxu0
    %v778 = vmax.f32 %v773, 0.0
    %v779 = vld [vmem:[%s2] sm:$0xff]
    %v780 = vld [vmem:[%s1] sm:$0xff]
    %v781 = vsub.f32 1.0, %v780
    %783 = vset.pattern.permute.xlu0 0
    %784 = vperm.xlu0 %783, %v781
    %v785 = vpop.permute.xlu0 %784
    %v787 = vmul.f32 %v779, %v785
    %v788 = vpack.c.bf16 %v778, %v778
    %v789 = vpack.c.bf16 %v787, %v787
    %v790 = vld [vmem:[%s5] sm:$0xf]
    %v791 = vld [vmem:[%s5 + $0x4] sm:$0xf]
    %v792 = vld [vmem:[%s5 + $0x8] sm:$0xf]
    %v793 = vld [vmem:[%s5 + $0xc] sm:$0xf]
    %v794 = vld [vmem:[%s5 + $0x10] sm:$0xf]
    %v795 = vld [vmem:[%s5 + $0x14] sm:$0xf]
    %v796 = vld [vmem:[%s5 + $0x18] sm:$0xf]
    %v797 = vld [vmem:[%s5 + $0x1c] sm:$0xf]
    %v798 = vld [vmem:[%s5 + $0x20] sm:$0xf]
    %v799 = vld [vmem:[%s5 + $0x24] sm:$0xf]
    %v800 = vld [vmem:[%s5 + $0x28] sm:$0xf]
    %v801 = vld [vmem:[%s5 + $0x2c] sm:$0xf]
    %v802 = vld [vmem:[%s5 + $0x30] sm:$0xf]
    %v803 = vld [vmem:[%s5 + $0x34] sm:$0xf]
    %v804 = vld [vmem:[%s5 + $0x38] sm:$0xf]
    %v805 = vld [vmem:[%s5 + $0x3c] sm:$0xf]
    %v806 = vld [vmem:[%s5 + $0x40] sm:$0xf]
    %v807 = vld [vmem:[%s5 + $0x44] sm:$0xf]
    %v808 = vld [vmem:[%s5 + $0x48] sm:$0xf]
    %v809 = vld [vmem:[%s5 + $0x4c] sm:$0xf]
    %v810 = vld [vmem:[%s5 + $0x50] sm:$0xf]
    %v811 = vld [vmem:[%s5 + $0x54] sm:$0xf]
    %v812 = vld [vmem:[%s5 + $0x58] sm:$0xf]
    %v813 = vld [vmem:[%s5 + $0x5c] sm:$0xf]
    %v814 = vld [vmem:[%s5 + $0x60] sm:$0xf]
    %v815 = vld [vmem:[%s5 + $0x64] sm:$0xf]
    %v816 = vld [vmem:[%s5 + $0x68] sm:$0xf]
    %v817 = vld [vmem:[%s5 + $0x6c] sm:$0xf]
    %v818 = vld [vmem:[%s5 + $0x70] sm:$0xf]
    %v819 = vld [vmem:[%s5 + $0x74] sm:$0xf]
    %v820 = vld [vmem:[%s5 + $0x78] sm:$0xf]
    %v821 = vld [vmem:[%s5 + $0x7c] sm:$0xf]
    %v822 = vld [vmem:[%s6] sm:$0x1]
    %v824 = vlaneseq
    %v825 = vshrl.u32 %v824, 7
    %v826 = vsub.s32 0, %v825
    %v827 = vrot.slane %v822, %v826
    %v861 = vunpack.c.l.b16 %v790
    %v862 = vunpack.c.l.b16 %v791
    %v863 = vunpack.c.l.b16 %v792
    %v864 = vunpack.c.l.b16 %v793
    %v865 = vunpack.c.l.b16 %v794
    %v866 = vunpack.c.l.b16 %v795
    %v867 = vunpack.c.l.b16 %v796
    %v868 = vunpack.c.l.b16 %v797
    %v869 = vunpack.c.l.b16 %v798
    %v870 = vunpack.c.l.b16 %v799
    %v871 = vunpack.c.l.b16 %v800
    %v872 = vunpack.c.l.b16 %v801
    %v873 = vunpack.c.l.b16 %v802
    %v874 = vunpack.c.l.b16 %v803
    %v875 = vunpack.c.l.b16 %v804
    %v876 = vunpack.c.l.b16 %v805
    %v877 = vunpack.c.l.b16 %v806
    %v878 = vunpack.c.l.b16 %v807
    %v879 = vunpack.c.l.b16 %v808
    %v880 = vunpack.c.l.b16 %v809
    %v881 = vunpack.c.l.b16 %v810
    %v882 = vunpack.c.l.b16 %v811
    %v883 = vunpack.c.l.b16 %v812
    %v884 = vunpack.c.l.b16 %v813
    %v885 = vunpack.c.l.b16 %v814
    %v886 = vunpack.c.l.b16 %v815
    %v887 = vunpack.c.l.b16 %v816
    %v888 = vunpack.c.l.b16 %v817
    %v889 = vunpack.c.l.b16 %v818
    %v890 = vunpack.c.l.b16 %v819
    %v891 = vunpack.c.l.b16 %v820
    %v892 = vunpack.c.l.b16 %v821
    %v893 = vpack.c.b16 %v862, %v861
    %v894 = vpack.c.b16 %v864, %v863
    %v895 = vpack.c.b16 %v866, %v865
    %v896 = vpack.c.b16 %v868, %v867
    %v897 = vpack.c.b16 %v870, %v869
    %v898 = vpack.c.b16 %v872, %v871
    %v899 = vpack.c.b16 %v874, %v873
    %v900 = vpack.c.b16 %v876, %v875
    %v901 = vpack.c.b16 %v878, %v877
    %v902 = vpack.c.b16 %v880, %v879
    %v903 = vpack.c.b16 %v882, %v881
    %v904 = vpack.c.b16 %v884, %v883
    %v905 = vpack.c.b16 %v886, %v885
    %v906 = vpack.c.b16 %v888, %v887
    %v907 = vpack.c.b16 %v890, %v889
    %v908 = vpack.c.b16 %v892, %v891
    %925 = vmatprep.subr.bf16.mxu0 0
    %926 = vmatpush1.bf16.msra.mxu0 %v893
    %927 = vmatprep.subr.bf16.mxu0 0
    %928 = vmatpush1.bf16.msra.mxu0 %v894
    %929 = vmatprep.subr.bf16.mxu0 0
    %930 = vmatpush1.bf16.msra.mxu0 %v895
    %931 = vmatprep.subr.bf16.mxu0 0
    %932 = vmatpush1.bf16.msra.mxu0 %v896
    %933 = vmatprep.subr.bf16.mxu0 0
    %934 = vmatpush1.bf16.msra.mxu0 %v897
    %935 = vmatprep.subr.bf16.mxu0 0
    %936 = vmatpush1.bf16.msra.mxu0 %v898
    %937 = vmatprep.subr.bf16.mxu0 0
    %938 = vmatpush1.bf16.msra.mxu0 %v899
    %939 = vmatprep.subr.bf16.mxu0 0
    %940 = vmatpush1.bf16.msra.mxu0 %v900
    %941 = vmatprep.subr.bf16.mxu0 0
    %942 = vmatpush1.bf16.msra.mxu0 %v901
    %943 = vmatprep.subr.bf16.mxu0 0
    %944 = vmatpush1.bf16.msra.mxu0 %v902
    %945 = vmatprep.subr.bf16.mxu0 0
    %946 = vmatpush1.bf16.msra.mxu0 %v903
    %947 = vmatprep.subr.bf16.mxu0 0
    %948 = vmatpush1.bf16.msra.mxu0 %v904
    %949 = vmatprep.subr.bf16.mxu0 0
    %950 = vmatpush1.bf16.msra.mxu0 %v905
    %951 = vmatprep.subr.bf16.mxu0 0
    %952 = vmatpush1.bf16.msra.mxu0 %v906
    %953 = vmatprep.subr.bf16.mxu0 0
    %954 = vmatpush1.bf16.msra.mxu0 %v907
    %955 = vmatprep.subr.bf16.mxu0 0
    %956 = vmatpush1.bf16.msra.mxu0 %v908
    %957 = vmatprep.mubr.bf16.mxu0 %v789
    %958 = vmatmul.mubr.bf16.gmra.mrb[0].mxu0 %v788
    %v959 = vpop.f32.mrb[0].mxu0
    %v960 = vadd.f32 %v827, %v959
    %v961 = vpop.f32.mrb[0].mxu0
    %v962 = vpop.f32.mrb[0].mxu0
    %v963 = vpop.f32.mrb[0].mxu0
    %964 = vdwg.mxu0
    %v965 = vtanh.pop %v960
    %v966 = vpack.c.bf16 %v965, %v965
    %v967 = vld [vmem:[#allocation4] sm:$0xff]
    %v968 = vld [vmem:[#allocation4 + $0x8] sm:$0xff]
    %v969 = vld [vmem:[#allocation4 + $0x10] sm:$0xff]
    %v970 = vld [vmem:[#allocation4 + $0x18] sm:$0xff]
    %v971 = vld [vmem:[#allocation4 + $0x20] sm:$0xff]
    %v972 = vld [vmem:[#allocation4 + $0x28] sm:$0xff]
    %v973 = vld [vmem:[#allocation4 + $0x30] sm:$0xff]
    %v974 = vld [vmem:[#allocation4 + $0x38] sm:$0xff]
    %v975 = vld [vmem:[#allocation4 + $0x40] sm:$0xff]
    %v976 = vld [vmem:[#allocation4 + $0x48] sm:$0xff]
    %v977 = vld [vmem:[#allocation4 + $0x50] sm:$0xff]
    %v978 = vld [vmem:[#allocation4 + $0x58] sm:$0xff]
    %v979 = vld [vmem:[#allocation4 + $0x60] sm:$0xff]
    %v980 = vld [vmem:[#allocation4 + $0x68] sm:$0xff]
    %v981 = vld [vmem:[#allocation4 + $0x70] sm:$0xff]
    %v982 = vld [vmem:[#allocation4 + $0x78] sm:$0xff]
    %v983 = vld [vmem:[%s8] sm:$0x3]
    %v985 = vlaneseq
    %v986 = vshrl.u32 %v985, 7
    %v987 = vsub.s32 0, %v986
    %v988 = vrot.slane %v983, %v987
    %v989 = vlaneseq
    %v990 = vshrl.u32 %v989, 7
    %v991 = vsub.s32 1, %v990
    %v992 = vrot.slane %v983, %v991
    %v1011 = vunpack.c.l.b16 %v967
    %v1012 = vunpack.c.h.b16 %v967
    %v1013 = vunpack.c.l.b16 %v968
    %v1014 = vunpack.c.h.b16 %v968
    %v1015 = vunpack.c.l.b16 %v969
    %v1016 = vunpack.c.h.b16 %v969
    %v1017 = vunpack.c.l.b16 %v970
    %v1018 = vunpack.c.h.b16 %v970
    %v1019 = vunpack.c.l.b16 %v971
    %v1020 = vunpack.c.h.b16 %v971
    %v1021 = vunpack.c.l.b16 %v972
    %v1022 = vunpack.c.h.b16 %v972
    %v1023 = vunpack.c.l.b16 %v973
    %v1024 = vunpack.c.h.b16 %v973
    %v1025 = vunpack.c.l.b16 %v974
    %v1026 = vunpack.c.h.b16 %v974
    %v1027 = vunpack.c.l.b16 %v975
    %v1028 = vunpack.c.h.b16 %v975
    %v1029 = vunpack.c.l.b16 %v976
    %v1030 = vunpack.c.h.b16 %v976
    %v1031 = vunpack.c.l.b16 %v977
    %v1032 = vunpack.c.h.b16 %v977
    %v1033 = vunpack.c.l.b16 %v978
    %v1034 = vunpack.c.h.b16 %v978
    %v1035 = vunpack.c.l.b16 %v979
    %v1036 = vunpack.c.h.b16 %v979
    %v1037 = vunpack.c.l.b16 %v980
    %v1038 = vunpack.c.h.b16 %v980
    %v1039 = vunpack.c.l.b16 %v981
    %v1040 = vunpack.c.h.b16 %v981
    %v1041 = vunpack.c.l.b16 %v982
    %v1042 = vunpack.c.h.b16 %v982
    %v1043 = vpack.c.b16 %v1013, %v1011
    %v1044 = vpack.c.b16 %v1014, %v1012
    %v1045 = vpack.c.b16 %v1017, %v1015
    %v1046 = vpack.c.b16 %v1018, %v1016
    %v1047 = vpack.c.b16 %v1021, %v1019
    %v1048 = vpack.c.b16 %v1022, %v1020
    %v1049 = vpack.c.b16 %v1025, %v1023
    %v1050 = vpack.c.b16 %v1026, %v1024
    %v1051 = vpack.c.b16 %v1029, %v1027
    %v1052 = vpack.c.b16 %v1030, %v1028
    %v1053 = vpack.c.b16 %v1033, %v1031
    %v1054 = vpack.c.b16 %v1034, %v1032
    %v1055 = vpack.c.b16 %v1037, %v1035
    %v1056 = vpack.c.b16 %v1038, %v1036
    %v1057 = vpack.c.b16 %v1041, %v1039
    %v1058 = vpack.c.b16 %v1042, %v1040
    %1075 = vmatprep.subr.bf16.mxu0 %v1044
    %1076 = vmatpush1.bf16.msra.mxu0 %v1043
    %1077 = vmatprep.subr.bf16.mxu0 %v1046
    %1078 = vmatpush1.bf16.msra.mxu0 %v1045
    %1079 = vmatprep.subr.bf16.mxu0 %v1048
    %1080 = vmatpush1.bf16.msra.mxu0 %v1047
    %1081 = vmatprep.subr.bf16.mxu0 %v1050
    %1082 = vmatpush1.bf16.msra.mxu0 %v1049
    %1083 = vmatprep.subr.bf16.mxu0 %v1052
    %1084 = vmatpush1.bf16.msra.mxu0 %v1051
    %1085 = vmatprep.subr.bf16.mxu0 %v1054
    %1086 = vmatpush1.bf16.msra.mxu0 %v1053
    %1087 = vmatprep.subr.bf16.mxu0 %v1056
    %1088 = vmatpush1.bf16.msra.mxu0 %v1055
    %1089 = vmatprep.subr.bf16.mxu0 %v1058
    %1090 = vmatpush1.bf16.msra.mxu0 %v1057
    %1091 = vmatprep.subr.bf16.mxu0 0
    %1092 = vmatpush1.bf16.msra.mxu0 0
    %1093 = vmatprep.subr.bf16.mxu0 0
    %1094 = vmatpush1.bf16.msra.mxu0 0
    %1095 = vmatprep.subr.bf16.mxu0 0
    %1096 = vmatpush1.bf16.msra.mxu0 0
    %1097 = vmatprep.subr.bf16.mxu0 0
    %1098 = vmatpush1.bf16.msra.mxu0 0
    %1099 = vmatprep.subr.bf16.mxu0 0
    %1100 = vmatpush1.bf16.msra.mxu0 0
    %1101 = vmatprep.subr.bf16.mxu0 0
    %1102 = vmatpush1.bf16.msra.mxu0 0
    %1103 = vmatprep.subr.bf16.mxu0 0
    %1104 = vmatpush1.bf16.msra.mxu0 0
    %1105 = vmatprep.subr.bf16.mxu0 0
    %1106 = vmatpush1.bf16.msra.mxu0 0
    %1107 = vmatprep.mubr.bf16.mxu0 0
    %1108 = vmatmul.mubr.bf16.gmra.mrb[0].mxu0 %v966
    %v1109 = vpop.f32.mrb[0].mxu0
    %v1110 = vadd.f32 %v988, %v1109
    %v1111 = vpop.f32.mrb[0].mxu0
    %v1112 = vadd.f32 %v992, %v1111
    %v1113 = vpop.f32.mrb[0].mxu0
    %v1114 = vpop.f32.mrb[0].mxu0
    %1115 = vdwg.mxu0
    %v1116 = vmax.f32 %v1110, 0.0
    %v1117 = vmax.f32 %v1112, 0.0
    %v1118 = vpack.c.bf16 %v1116, %v1116
    %v1119 = vpack.c.bf16 %v1117, %v1117
    %v1120 = vld [vmem:[#allocation6] sm:$0xf]
    %v1121 = vld [vmem:[#allocation6 + $0x4] sm:$0xf]
    %v1122 = vld [vmem:[#allocation6 + $0x8] sm:$0xf]
    %v1123 = vld [vmem:[#allocation6 + $0xc] sm:$0xf]
    %v1124 = vld [vmem:[#allocation6 + $0x10] sm:$0xf]
    %v1125 = vld [vmem:[#allocation6 + $0x14] sm:$0xf]
    %v1126 = vld [vmem:[#allocation6 + $0x18] sm:$0xf]
    %v1127 = vld [vmem:[#allocation6 + $0x1c] sm:$0xf]
    %v1128 = vld [vmem:[#allocation6 + $0x20] sm:$0xf]
    %v1129 = vld [vmem:[#allocation6 + $0x24] sm:$0xf]
    %v1130 = vld [vmem:[#allocation6 + $0x28] sm:$0xf]
    %v1131 = vld [vmem:[#allocation6 + $0x2c] sm:$0xf]
    %v1132 = vld [vmem:[#allocation6 + $0x30] sm:$0xf]
    %v1133 = vld [vmem:[#allocation6 + $0x34] sm:$0xf]
    %v1134 = vld [vmem:[#allocation6 + $0x38] sm:$0xf]
    %v1135 = vld [vmem:[#allocation6 + $0x3c] sm:$0xf]
    %v1136 = vld [vmem:[#allocation6 + $0x40] sm:$0xf]
    %v1137 = vld [vmem:[#allocation6 + $0x44] sm:$0xf]
    %v1138 = vld [vmem:[#allocation6 + $0x48] sm:$0xf]
    %v1139 = vld [vmem:[#allocation6 + $0x4c] sm:$0xf]
    %v1140 = vld [vmem:[#allocation6 + $0x50] sm:$0xf]
    %v1141 = vld [vmem:[#allocation6 + $0x54] sm:$0xf]
    %v1142 = vld [vmem:[#allocation6 + $0x58] sm:$0xf]
    %v1143 = vld [vmem:[#allocation6 + $0x5c] sm:$0xf]
    %v1144 = vld [vmem:[#allocation6 + $0x60] sm:$0xf]
    %v1145 = vld [vmem:[#allocation6 + $0x64] sm:$0xf]
    %v1146 = vld [vmem:[#allocation6 + $0x68] sm:$0xf]
    %v1147 = vld [vmem:[#allocation6 + $0x6c] sm:$0xf]
    %v1148 = vld [vmem:[#allocation6 + $0x70] sm:$0xf]
    %v1149 = vld [vmem:[#allocation6 + $0x74] sm:$0xf]
    %v1150 = vld [vmem:[#allocation6 + $0x78] sm:$0xf]
    %v1151 = vld [vmem:[#allocation6 + $0x7c] sm:$0xf]
    %v1152 = vld [vmem:[%s10] sm:$0x1]
    %v1154 = vlaneseq
    %v1155 = vshrl.u32 %v1154, 7
    %v1156 = vsub.s32 0, %v1155
    %v1157 = vrot.slane %v1152, %v1156
    %v1191 = vunpack.c.l.b16 %v1120
    %v1192 = vunpack.c.l.b16 %v1121
    %v1193 = vunpack.c.l.b16 %v1122
    %v1194 = vunpack.c.l.b16 %v1123
    %v1195 = vunpack.c.l.b16 %v1124
    %v1196 = vunpack.c.l.b16 %v1125
    %v1197 = vunpack.c.l.b16 %v1126
    %v1198 = vunpack.c.l.b16 %v1127
    %v1199 = vunpack.c.l.b16 %v1128
    %v1200 = vunpack.c.l.b16 %v1129
    %v1201 = vunpack.c.l.b16 %v1130
    %v1202 = vunpack.c.l.b16 %v1131
    %v1203 = vunpack.c.l.b16 %v1132
    %v1204 = vunpack.c.l.b16 %v1133
    %v1205 = vunpack.c.l.b16 %v1134
    %v1206 = vunpack.c.l.b16 %v1135
    %v1207 = vunpack.c.l.b16 %v1136
    %v1208 = vunpack.c.l.b16 %v1137
    %v1209 = vunpack.c.l.b16 %v1138
    %v1210 = vunpack.c.l.b16 %v1139
    %v1211 = vunpack.c.l.b16 %v1140
    %v1212 = vunpack.c.l.b16 %v1141
    %v1213 = vunpack.c.l.b16 %v1142
    %v1214 = vunpack.c.l.b16 %v1143
    %v1215 = vunpack.c.l.b16 %v1144
    %v1216 = vunpack.c.l.b16 %v1145
    %v1217 = vunpack.c.l.b16 %v1146
    %v1218 = vunpack.c.l.b16 %v1147
    %v1219 = vunpack.c.l.b16 %v1148
    %v1220 = vunpack.c.l.b16 %v1149
    %v1221 = vunpack.c.l.b16 %v1150
    %v1222 = vunpack.c.l.b16 %v1151
    %v1223 = vpack.c.b16 %v1192, %v1191
    %v1224 = vpack.c.b16 %v1194, %v1193
    %v1225 = vpack.c.b16 %v1196, %v1195
    %v1226 = vpack.c.b16 %v1198, %v1197
    %v1227 = vpack.c.b16 %v1200, %v1199
    %v1228 = vpack.c.b16 %v1202, %v1201
    %v1229 = vpack.c.b16 %v1204, %v1203
    %v1230 = vpack.c.b16 %v1206, %v1205
    %v1231 = vpack.c.b16 %v1208, %v1207
    %v1232 = vpack.c.b16 %v1210, %v1209
    %v1233 = vpack.c.b16 %v1212, %v1211
    %v1234 = vpack.c.b16 %v1214, %v1213
    %v1235 = vpack.c.b16 %v1216, %v1215
    %v1236 = vpack.c.b16 %v1218, %v1217
    %v1237 = vpack.c.b16 %v1220, %v1219
    %v1238 = vpack.c.b16 %v1222, %v1221
    %1255 = vmatprep.subr.bf16.mxu0 0
    %1256 = vmatpush1.bf16.msra.mxu0 %v1223
    %1257 = vmatprep.subr.bf16.mxu0 0
    %1258 = vmatpush1.bf16.msra.mxu0 %v1224
    %1259 = vmatprep.subr.bf16.mxu0 0
    %1260 = vmatpush1.bf16.msra.mxu0 %v1225
    %1261 = vmatprep.subr.bf16.mxu0 0
    %1262 = vmatpush1.bf16.msra.mxu0 %v1226
    %1263 = vmatprep.subr.bf16.mxu0 0
    %1264 = vmatpush1.bf16.msra.mxu0 %v1227
    %1265 = vmatprep.subr.bf16.mxu0 0
    %1266 = vmatpush1.bf16.msra.mxu0 %v1228
    %1267 = vmatprep.subr.bf16.mxu0 0
    %1268 = vmatpush1.bf16.msra.mxu0 %v1229
    %1269 = vmatprep.subr.bf16.mxu0 0
    %1270 = vmatpush1.bf16.msra.mxu0 %v1230
    %1271 = vmatprep.subr.bf16.mxu0 0
    %1272 = vmatpush1.bf16.msra.mxu0 %v1231
    %1273 = vmatprep.subr.bf16.mxu0 0
    %1274 = vmatpush1.bf16.msra.mxu0 %v1232
    %1275 = vmatprep.subr.bf16.mxu0 0
    %1276 = vmatpush1.bf16.msra.mxu0 %v1233
    %1277 = vmatprep.subr.bf16.mxu0 0
    %1278 = vmatpush1.bf16.msra.mxu0 %v1234
    %1279 = vmatprep.subr.bf16.mxu0 0
    %1280 = vmatpush1.bf16.msra.mxu0 %v1235
    %1281 = vmatprep.subr.bf16.mxu0 0
    %1282 = vmatpush1.bf16.msra.mxu0 %v1236
    %1283 = vmatprep.subr.bf16.mxu0 0
    %1284 = vmatpush1.bf16.msra.mxu0 %v1237
    %1285 = vmatprep.subr.bf16.mxu0 0
    %1286 = vmatpush1.bf16.msra.mxu0 %v1238
    %1287 = vmatprep.mubr.bf16.mxu0 %v1119
    %1288 = vmatmul.mubr.bf16.gmra.mrb[0].mxu0 %v1118
    %v1289 = vpop.f32.mrb[0].mxu0
    %v1290 = vadd.f32 %v1157, %v1289
    %v1291 = vpop.f32.mrb[0].mxu0
    %v1292 = vpop.f32.mrb[0].mxu0
    %v1293 = vpop.f32.mrb[0].mxu0
    %1294 = vdwg.mxu0
    %1295 = vst [vmem:[%s11] sm:$0xff] %v1290
    %1296 = vst [vmem:[%s12] sm:$0xff] %v1116
    %1297 = vst [vmem:[%s12 + $0x8] sm:$0xff] %v1117
    %1298 = vst [vmem:[%s13] sm:$0xff] %v965
    // Predicated region
    $region58: #{vpt_forward_pallas.1} parent=1 // pred_check
      _
    $region59: #{vpt_forward_pallas.1} parent=1 // pred_check_branch
      %1300 = sbr.rel (0) target = $region61
    $region60: #{vpt_forward_pallas.1} parent=1 // pred_region
      _
    $region61: #{vpt_forward_pallas.1} parent=1 // pred_fallthru
      _
    // Predicated region
    $region62: #{vpt_forward_pallas.1} parent=1 // pred_check
      _
    $region63: #{vpt_forward_pallas.1} parent=1 // pred_check_branch
      %1302 = sbr.rel (0) target = $region65
    $region64: #{vpt_forward_pallas.1} parent=1 // pred_region
      _
    $region65: #{vpt_forward_pallas.1} parent=1 // pred_fallthru
      _
    // Predicated region
    $region66: #{vpt_forward_pallas.1} parent=1 // pred_check
      _
    $region67: #{vpt_forward_pallas.1} parent=1 // pred_check_branch
      %1304 = sbr.rel (0) target = $region69
    $region68: #{vpt_forward_pallas.1} parent=1 // pred_region
      _
    $region69: #{vpt_forward_pallas.1} parent=1 // pred_fallthru
      _
    // Predicated region
    $region70: #{vpt_forward_pallas.1} parent=1 // pred_check
      _
    $region71: #{vpt_forward_pallas.1} parent=1 // pred_check_branch
      %1306 = sbr.rel (0) target = $region73
    $region72: #{vpt_forward_pallas.1} parent=1 // pred_region
      _
    $region73: #{vpt_forward_pallas.1} parent=1 // pred_fallthru
      _
    // Predicated region
    $region74: #{vpt_forward_pallas.1} parent=1 // pred_check
      _
    $region75: #{vpt_forward_pallas.1} parent=1 // pred_check_branch
      %1308 = sbr.rel (0) target = $region77
    $region76: #{vpt_forward_pallas.1} parent=1 // pred_region
      _
    $region77: #{vpt_forward_pallas.1} parent=1 // pred_fallthru
      _
    // Predicated region
    $region78: #{vpt_forward_pallas.1} parent=1 // pred_check
      _
    $region79: #{vpt_forward_pallas.1} parent=1 // pred_check_branch
      %1310 = sbr.rel (0) target = $region81
    $region80: #{vpt_forward_pallas.1} parent=1 // pred_region
      _
    $region81: #{vpt_forward_pallas.1} parent=1 // pred_fallthru
      _
    %1311 = vsyncpa [#allocation3], 1
    %1312 = vsyncpa [#allocation5], 1

</llo_original>
